<compile_context>
chip_gen: v7x
topology: tpu7x:2x2x1
jax: 0.10.0
libtpu: 0.0.40
codegen_flags: <defaults>
</compile_context>

<pallas_src>
import functools

import jax
import jax.numpy as jnp
from jax import lax
from jax.experimental import pallas as pl
from jax.experimental.pallas import tpu as pltpu


def _round_up(x, m):
    return ((x + m - 1) // m) * m


def _regression_head_kernel(x_ref, w_ref, b_ref, o_ref, *, precision):
    # x_ref: (tm, C), w_ref: (OUT, C), b_ref: (1, OUT), o_ref: (tm, OUT)
    y = lax.dot_general(
        x_ref[...], w_ref[...],
        dimension_numbers=(((1,), (1,)), ((), ())),   # contract on C
        preferred_element_type=jnp.float32,           # f32 MXU accumulate
        precision=precision,
    )
    o_ref[...] = (y + b_ref[...]).astype(o_ref.dtype)


def _choose_batch_tile(N, C, in_itemsize):
    """Batch tile sized by a VMEM byte budget (not a fixed row cap)."""
    if N <= 8:
        # Full-extent block (block dim == array dim): no raggedness at tiny N.
        return N
    per_buffer_budget = 4 << 20                       # ~4 MiB per X buffer
    tm = per_buffer_budget // max(1, C * in_itemsize)
    tm = max(512, min(8192, tm))
    tm = min(tm, _round_up(N, 8))
    tm = _round_up(tm, 8)
    # Keep >= 2 grid steps for large N so the "parallel" batch axis can
    # shard across both TensorCores on v7x (one grid step == one idle TC).
    if N >= 1024 and pl.cdiv(N, tm) < 2:
        tm = _round_up(pl.cdiv(N, 2), 8)
    return tm


def temporal_regression_head(x, weight, bias, num_joints, *,
                             compute_dtype=None, precision=None):
    """x: (N, C, 1); weight: (num_joints*3, C, 1); bias: (num_joints*3,).

    compute_dtype: optional dtype for the streamed X / resident W operands
    (jnp.bfloat16 halves HBM read traffic at scale); accumulation and the
    bias add are always f32 and the output dtype matches x.dtype.
    precision: optional lax.Precision for the in-kernel dot (HIGHEST for
    strict f32 parity with the PyTorch reference).
    """
    N, C, L = x.shape
    assert L == 1, "reshape(N, num_joints, 3) implies temporal length 1"
    out_ch = num_joints * 3

    in_dtype = jnp.dtype(compute_dtype) if compute_dtype is not None else x.dtype
    out_dtype = x.dtype
    in_itemsize = jnp.dtype(in_dtype).itemsize
    out_itemsize = jnp.dtype(out_dtype).itemsize

    # Squeeze the length-1 temporal axis; no batch / channel / output padding
    # anywhere in the wrapper (each pad would be an extra HBM pass).
    x2d = x.reshape(N, C).astype(in_dtype)
    w2d = weight.reshape(out_ch, C).astype(in_dtype)    # (OUT, C): no transpose
    b2d = bias.astype(jnp.float32).reshape(1, out_ch)

    tm = _choose_batch_tile(N, C, in_itemsize)
    num_blocks = pl.cdiv(N, tm)

    # Explicit scoped-VMEM limit: v5e defaults to only 16 MiB; cap well below
    # v7x's 64 MiB physical VMEM so full double-buffering survives there.
    working = (2 * tm * C * in_itemsize            # double-buffered X tiles
               + 2 * tm * out_ch * out_itemsize    # double-buffered Y tiles
               + out_ch * C * in_itemsize          # resident W
               + out_ch * 4)                       # resident bias
    vmem_limit = int(min(48 << 20, max(4 * working, 16 << 20)))

    # Deepen the pipeline on the streamed operand only when the grid is long
    # enough to profit (per-step compute is tiny; the loop is DMA-issue bound).
    if num_blocks >= 3:
        x_spec = pl.BlockSpec((tm, C), lambda i: (i, 0),
                              pipeline_mode=pl.Buffered(3))
    else:
        x_spec = pl.BlockSpec((tm, C), lambda i: (i, 0))

    cost = pl.CostEstimate(
        flops=2 * N * C * out_ch,
        transcendentals=0,
        bytes_accessed=(N * C * in_itemsize + out_ch * C * in_itemsize
                        + out_ch * 4 + N * out_ch * out_itemsize),
    )

    y = pl.pallas_call(
        functools.partial(_regression_head_kernel, precision=precision),
        out_shape=jax.ShapeDtypeStruct((N, out_ch), out_dtype),
        grid=(num_blocks,),
        in_specs=[
            x_spec,                                       # X streams over batch
            pl.BlockSpec((out_ch, C), lambda i: (0, 0)),  # W resident in VMEM
            pl.BlockSpec((1, out_ch), lambda i: (0, 0)),  # bias resident
        ],
        out_specs=pl.BlockSpec((tm, out_ch), lambda i: (i, 0)),
        compiler_params=pltpu.CompilerParams(
            dimension_semantics=("parallel",),
            vmem_limit_bytes=vmem_limit,
        ),
        cost_estimate=cost,
    )(x2d, w2d, b2d)

    return y.reshape(N, num_joints, 3)


if __name__ == "__main__":
    # Small deterministic config implied by the module's forward.
    N = 2
    in_channels = 32
    num_joints = 8
    out_ch = num_joints * 3

    key = jax.random.PRNGKey(0)
    kx, kw, kb = jax.random.split(key, 3)

    # Input implied by the forward: (N, in_channels, 1)
    x = jax.random.normal(kx, (N, in_channels, 1), dtype=jnp.float32)

    # Conv1d(in_channels, out_ch, kernel_size=1) parameters, deterministic
    # uniform init mimicking PyTorch's default bound 1/sqrt(fan_in).
    bound = 1.0 / jnp.sqrt(jnp.float32(in_channels))
    weight = jax.random.uniform(
        kw, (out_ch, in_channels, 1), dtype=jnp.float32, minval=-bound, maxval=bound
    )
    bias = jax.random.uniform(
        kb, (out_ch,), dtype=jnp.float32, minval=-bound, maxval=bound
    )

    # Reference in plain JAX (same math as the PyTorch module).
    ref = (x.reshape(N, in_channels) @ weight.reshape(out_ch, in_channels).T
           + bias).reshape(N, num_joints, 3)

    # f32 path: exact module semantics.
    out = jax.block_until_ready(
        temporal_regression_head(x, weight, bias, num_joints))
    assert out.shape == (N, num_joints, 3)
    assert out.dtype == jnp.float32
    assert jnp.allclose(out, ref, atol=1e-5, rtol=1e-5)

    # bf16-input path: halves HBM read traffic at scale; f32 accumulate.
    out_bf16 = jax.block_until_ready(
        temporal_regression_head(x, weight, bias, num_joints,
                                 compute_dtype=jnp.bfloat16))
    assert jnp.allclose(out_bf16, ref, atol=3e-2, rtol=3e-2)

    print("KERNEL_OK")
</pallas_src>

<mosaic_0001>
module attributes {stable_mosaic.version = 11 : i64} {
  func.func @_regression_head_kernel(%arg0: i32, %arg1: memref<2x32xf32, #tpu.memory_space<vmem>>, %arg2: memref<24x32xf32, #tpu.memory_space<vmem>>, %arg3: memref<1x24xf32, #tpu.memory_space<vmem>>, %arg4: memref<2x24xf32, #tpu.memory_space<vmem>>) attributes {dimension_semantics = [#tpu.dimension_semantics<parallel>], iteration_bounds = array<i64: 1>, scalar_prefetch = 0 : i64, scratch_operands = 0 : i64, tpu.core_type = #tpu.core_type<tc>, window_params = [{transform_indices = @transform_0, window_bounds = array<i64: 2, 32>}, {pipeline_mode = #tpu.pipeline_mode<synchronous>, transform_indices = @transform_1, window_bounds = array<i64: 24, 32>}, {pipeline_mode = #tpu.pipeline_mode<synchronous>, transform_indices = @transform_2, window_bounds = array<i64: 1, 24>}, {transform_indices = @transform_3, window_bounds = array<i64: 2, 24>}]} {
    %c0 = arith.constant 0 : index
    %c0_0 = arith.constant 0 : index
    %0 = vector.load %arg1[%c0, %c0_0] : memref<2x32xf32, #tpu.memory_space<vmem>>, vector<2x32xf32>
    %c0_1 = arith.constant 0 : index
    %c0_2 = arith.constant 0 : index
    %1 = vector.load %arg2[%c0_1, %c0_2] : memref<24x32xf32, #tpu.memory_space<vmem>>, vector<24x32xf32>
    %cst = arith.constant dense<0.000000e+00> : vector<2x24xf32>
    %2 = tpu.matmul %0, %1, %cst {dimension_numbers = #tpu.dot_dimension_numbers<[1], [1], [0], [0], [0, 0, 1, 0], [], []>} : vector<2x32xf32>, vector<24x32xf32>, vector<2x24xf32> -> vector<2x24xf32>
    %c0_3 = arith.constant 0 : index
    %c0_4 = arith.constant 0 : index
    %3 = vector.load %arg3[%c0_3, %c0_4] : memref<1x24xf32, #tpu.memory_space<vmem>>, vector<1x24xf32>
    %4 = vector.broadcast %3 : vector<1x24xf32> to vector<2x24xf32>
    %5 = arith.addf %2, %4 : vector<2x24xf32>
    %c0_5 = arith.constant 0 : index
    %c0_6 = arith.constant 0 : index
    %6 = vector.load %arg4[%c0_5, %c0_6] : memref<2x24xf32, #tpu.memory_space<vmem>>, vector<2x24xf32>
    tpu.vector_store %arg4[%c0_5, %c0_6], %5 {strides = array<i32>} : memref<2x24xf32, #tpu.memory_space<vmem>>, vector<2x24xf32>,
    return
  }
  func.func @transform_0(%arg0: i32) -> (i32, i32) {
    %c0_i32 = arith.constant 0 : i32
    %c0_i32_0 = arith.constant 0 : i32
    return %arg0, %c0_i32 : i32, i32
  }
  func.func @transform_1(%arg0: i32) -> (i32, i32) {
    %c0_i32 = arith.constant 0 : i32
    %c0_i32_0 = arith.constant 0 : i32
    %c0_i32_1 = arith.constant 0 : i32
    return %c0_i32, %c0_i32_0 : i32, i32
  }
  func.func @transform_2(%arg0: i32) -> (i32, i32) {
    %c0_i32 = arith.constant 0 : i32
    %c0_i32_0 = arith.constant 0 : i32
    %c0_i32_1 = arith.constant 0 : i32
    return %c0_i32, %c0_i32_0 : i32, i32
  }
  func.func @transform_3(%arg0: i32) -> (i32, i32) {
    %c0_i32 = arith.constant 0 : i32
    %c0_i32_0 = arith.constant 0 : i32
    return %arg0, %c0_i32 : i32, i32
  }
}

</mosaic_0001>

<llo_original>
// kernel: tpu_custom_call.1
$region0: #{tpu_custom_call.1}
  #allocation0 [shape = 'u32[]', space=smem, size = 0x4, offset = 0x4, fixed_abs, tag = 'smem constant byte address 0x4 - core index']
  #allocation1 [shape = 'u32[144,128]{1,0:T(1,128)}', space=vmem, size = 0x12000, scoped, tag = 'internal scratch']
  %s0 = inlined_call_operand.hbm [shape: f32[2,32], index: 0, kind: input, shape index: {}]
  %s1 = inlined_call_operand.hbm [shape: f32[24,32], index: 1, kind: input, shape index: {}]
  %s2 = inlined_call_operand.vmem [shape: f32[1,24], index: 2, kind: input, shape index: {}]
  %s3 = inlined_call_operand.hbm [shape: f32[2,24], index: 3, kind: output, shape index: {}]
  %s4 = sld [smem:[#allocation0]]
  $region30: #{tpu_custom_call.1} parent=0
    _
  %s6 = ssub.s32 1, %s4
  %s7 = scalar_select 0, %s6, %s4
  $region1: #{tpu_custom_call.1} parent=0
    #allocation2 [shape = 'u8[1024]{0}', space=vmem, size = 0x400, scoped, tag = 'input window, operand 0, single buffered']
    #allocation3 [shape = 's32[1]{0}', space=sflag, size = 0x4, scoped, tag = 'scoped memory for tpu_custom_call.1']
    #allocation4 [shape = 's32[1]{0}', space=sflag, size = 0x4, scoped, tag = 'scoped memory for tpu_custom_call.1']
    #allocation5 [shape = 'u8[12288]{0}', space=vmem, size = 0x3000, scoped, tag = 'input window, operand 1, single buffered']
    #allocation6 [shape = 's32[1]{0}', space=sflag, size = 0x4, scoped, tag = 'scoped memory for tpu_custom_call.1']
    #allocation7 [shape = 'u8[1024]{0}', space=vmem, size = 0x400, scoped, tag = 'output window, operand 0, single buffered']
    %8 = vsyncpa [#allocation3], 0
    %9 = vsyncpa [#allocation6], 0
    %10 = vsyncpa [#allocation4], 0
    // Predicated region
    $region2: #{tpu_custom_call.1} parent=1 // pred_check
      _
    $region3: #{tpu_custom_call.1} parent=1 // pred_check_branch
      %12 = sbr.rel (0) target = $region5
    $region4: #{tpu_custom_call.1} parent=1 // pred_region
      %s14 = ssub.s32 32, 32
      %15 = vsyncadd [#allocation3], %s14
      %s17 = sshll.u32 [#allocation2], 4
      %s18 = int_to_ptr.vmem [resolvable:$true] %s17
      %20 = dma.hbm_to_vmem [thread:$0]  %s0, 32, %s18, [#allocation3]
    $region5: #{tpu_custom_call.1} parent=1 // pred_fallthru
      _
    // Predicated region
    $region6: #{tpu_custom_call.1} parent=1 // pred_check
      _
    $region7: #{tpu_custom_call.1} parent=1 // pred_check_branch
      %22 = sbr.rel (0) target = $region9
    $region8: #{tpu_custom_call.1} parent=1 // pred_region
      %s24 = ssub.s32 384, 384
      %25 = vsyncadd [#allocation6], %s24
      %s26 = sshll.u32 [#allocation5], 4
      %s27 = int_to_ptr.vmem [resolvable:$true] %s26
      %32 = dma.hbm_to_vmem [thread:$0]  %s1, 384, %s27, [#allocation6], 128, 128, 8
    $region9: #{tpu_custom_call.1} parent=1 // pred_fallthru
      _
    // Predicated region
    $region10: #{tpu_custom_call.1} parent=1 // pred_check
      _
    $region11: #{tpu_custom_call.1} parent=1 // pred_check_branch
      %34 = sbr.rel (0) target = $region13
    $region12: #{tpu_custom_call.1} parent=1 // pred_region
      _
    $region13: #{tpu_custom_call.1} parent=1 // pred_fallthru
      _
    // Predicated region
    $region14: #{tpu_custom_call.1} parent=1 // pred_check
      _
    $region15: #{tpu_custom_call.1} parent=1 // pred_check_branch
      %36 = sbr.rel (0) target = $region17
    $region16: #{tpu_custom_call.1} parent=1 // pred_region
      %37 = dma.done [#allocation3], 32
    $region17: #{tpu_custom_call.1} parent=1 // pred_fallthru
      _
    // Predicated region
    $region18: #{tpu_custom_call.1} parent=1 // pred_check
      _
    $region19: #{tpu_custom_call.1} parent=1 // pred_check_branch
      %39 = sbr.rel (0) target = $region21
    $region20: #{tpu_custom_call.1} parent=1 // pred_region
      %40 = dma.done [#allocation6], 384
    $region21: #{tpu_custom_call.1} parent=1 // pred_fallthru
      _
    %v41 = vld [vmem:[#allocation2] sm:$0x3]
    %v42 = vld [vmem:[#allocation5] sm:$0xff]
    %v43 = vld [vmem:[#allocation5 + $0x8] sm:$0xff]
    %v44 = vld [vmem:[#allocation5 + $0x10] sm:$0xff]
    %v45 = vld [vmem:[%s2] sm:$0x1]
    %v47 = vlaneseq
    %v48 = vshrl.u32 %v47, 7
    %v49 = vsub.s32 0, %v48
    %v50 = vrot.slane %v45, %v49
    %vm52 = vcmask 261120
    %v54 = vsel %vm52, %v41, 0
    %v57 = vsel %vm52, %v42, 0
    %v60 = vsel %vm52, %v43, 0
    %v63 = vsel %vm52, %v44, 0
    %65 = vmatprep.subr.mxu0 0.0
    %66 = vmatpush1.xpose.msra.mxu0 %v57
    %67 = vmatprep.subr.mxu0 0.0
    %68 = vmatpush1.xpose.msra.mxu0 %v60
    %69 = vmatprep.subr.mxu0 0.0
    %70 = vmatpush1.xpose.msra.mxu0 %v63
    %71 = vmatprep.subr.mxu0 0.0
    %72 = vmatpush1.xpose.msra.mxu0 0.0
    %73 = vmatprep.subr.mxu0 0.0
    %74 = vmatpush1.xpose.msra.mxu0 0.0
    %75 = vmatprep.subr.mxu0 0.0
    %76 = vmatpush1.xpose.msra.mxu0 0.0
    %77 = vmatprep.subr.mxu0 0.0
    %78 = vmatpush1.xpose.msra.mxu0 0.0
    %79 = vmatprep.subr.mxu0 0.0
    %80 = vmatpush1.xpose.msra.mxu0 0.0
    %81 = vmatprep.subr.mxu0 0.0
    %82 = vmatpush1.xpose.msra.mxu0 0.0
    %83 = vmatprep.subr.mxu0 0.0
    %84 = vmatpush1.xpose.msra.mxu0 0.0
    %85 = vmatprep.subr.mxu0 0.0
    %86 = vmatpush1.xpose.msra.mxu0 0.0
    %87 = vmatprep.subr.mxu0 0.0
    %88 = vmatpush1.xpose.msra.mxu0 0.0
    %89 = vmatprep.subr.mxu0 0.0
    %90 = vmatpush1.xpose.msra.mxu0 0.0
    %91 = vmatprep.subr.mxu0 0.0
    %92 = vmatpush1.xpose.msra.mxu0 0.0
    %93 = vmatprep.subr.mxu0 0.0
    %94 = vmatpush1.xpose.msra.mxu0 0.0
    %95 = vmatprep.subr.mxu0 0.0
    %96 = vmatpush1.xpose.msra.mxu0 0.0
    %97 = vmatprep.subr.mxu0 0.0
    %98 = vmatpush1.xpose.msra.mxu0 0.0
    %99 = vmatprep.subr.mxu0 0.0
    %100 = vmatpush1.xpose.msra.mxu0 0.0
    %101 = vmatprep.subr.mxu0 0.0
    %102 = vmatpush1.xpose.msra.mxu0 0.0
    %103 = vmatprep.subr.mxu0 0.0
    %104 = vmatpush1.xpose.msra.mxu0 0.0
    %105 = vmatprep.subr.mxu0 0.0
    %106 = vmatpush1.xpose.msra.mxu0 0.0
    %107 = vmatprep.subr.mxu0 0.0
    %108 = vmatpush1.xpose.msra.mxu0 0.0
    %109 = vmatprep.subr.mxu0 0.0
    %110 = vmatpush1.xpose.msra.mxu0 0.0
    %111 = vmatprep.subr.mxu0 0.0
    %112 = vmatpush1.xpose.msra.mxu0 0.0
    %113 = vmatprep.subr.mxu0 0.0
    %114 = vmatpush1.xpose.msra.mxu0 0.0
    %115 = vmatprep.subr.mxu0 0.0
    %116 = vmatpush1.xpose.msra.mxu0 0.0
    %117 = vmatprep.subr.mxu0 0.0
    %118 = vmatpush1.xpose.msra.mxu0 0.0
    %119 = vmatprep.subr.mxu0 0.0
    %120 = vmatpush1.xpose.msra.mxu0 0.0
    %121 = vmatprep.subr.mxu0 0.0
    %122 = vmatpush1.xpose.msra.mxu0 0.0
    %123 = vmatprep.subr.mxu0 0.0
    %124 = vmatpush1.xpose.msra.mxu0 0.0
    %125 = vmatprep.subr.mxu0 0.0
    %126 = vmatpush1.xpose.msra.mxu0 0.0
    %127 = vmatprep.subr.mxu0 0.0
    %128 = vmatpush1.xpose.msra.mxu0 0.0
    %129 = vmatprep.mubr.f32.mxu0 0.0
    %130 = vmatmul.mubr.f32.gmra.mrb[0].mxu0 %v54
    %v131 = vpop.f32.mrb[0].mxu0
    %v132 = vadd.f32 %v50, %v131
    %v133 = vpop.f32.mrb[0].mxu0
    %134 = vdwg.mxu0
    %vm135 = vcmask 189440
    %136 = vst.msk [vmem:[#allocation7] sm:$0x3] %vm135, %v132
    // Predicated region
    $region22: #{tpu_custom_call.1} parent=1 // pred_check
      _
    $region23: #{tpu_custom_call.1} parent=1 // pred_check_branch
      %138 = sbr.rel (0) target = $region25
    $region24: #{tpu_custom_call.1} parent=1 // pred_region
      %s140 = ssub.s32 32, 32
      %141 = vsyncadd [#allocation4], %s140
      %s143 = sshll.u32 [#allocation7], 4
      %s144 = int_to_ptr.vmem [resolvable:$true] %s143
      %146 = dma.vmem_to_hbm [thread:$0]  %s144, 32, %s3, [#allocation4]
    $region25: #{tpu_custom_call.1} parent=1 // pred_fallthru
      _
    // Predicated region
    $region26: #{tpu_custom_call.1} parent=1 // pred_check
      _
    $region27: #{tpu_custom_call.1} parent=1 // pred_check_branch
      %148 = sbr.rel (0) target = $region29
    $region28: #{tpu_custom_call.1} parent=1 // pred_region
      %149 = dma.done [#allocation4], 32
    $region29: #{tpu_custom_call.1} parent=1 // pred_fallthru
      _
    %150 = vsyncpa [#allocation3], 1
    %151 = vsyncpa [#allocation6], 1
    %152 = vsyncpa [#allocation4], 1

</llo_original>
